<compile_context>
chip_gen: v5e
topology: v5e:2x2
jax: 0.10.0
libtpu: 0.0.40
codegen_flags: <defaults>
</compile_context>

<pallas_src>
import jax
import jax.numpy as jnp
from jax.experimental import pallas as pl
from jax.experimental.pallas import tpu as pltpu


def _round_up(n, m):
    return ((n + m - 1) // m) * m


def qnet_kernel(x_ref, w1_ref, b1_ref, w2_ref, b2_ref, out_ref):
    # linear1 + bias + ReLU (f32 accumulation on the MXU; Mosaic masks the
    # unaligned K=in_features contraction internally).
    x = x_ref[...].astype(w1_ref.dtype)
    h = jnp.dot(x, w1_ref[...], preferred_element_type=jnp.float32)
    h = jnp.maximum(h + b1_ref[...].astype(jnp.float32), 0.0)
    # linear2 + bias (output kept at its true lane width; masked store is
    # far cheaper than 128-lane-padded HBM writes for this mem-bound kernel).
    y = jnp.dot(h.astype(w2_ref.dtype), w2_ref[...],
                preferred_element_type=jnp.float32)
    out_ref[...] = (y + b2_ref[...].astype(jnp.float32)).astype(out_ref.dtype)


def prepare_params(w1, b1, w2, b2):
    """One-time packing of PyTorch-layout params (hoisted off the hot path).

    w1: (hidden, in), b1: (hidden,), w2: (out, hidden), b2: (out,)
    Only the hidden dim is zero-padded to 128 lanes (exact: padded hidden
    columns/rows contribute 0 through ReLU and the second matmul). Input and
    output feature dims are kept at their true widths so no padded bytes are
    streamed through HBM per call.
    """
    hidden, in_f = w1.shape
    out_f = w2.shape[0]
    hid_p = _round_up(hidden, 128)

    w1t = jnp.zeros((in_f, hid_p), w1.dtype).at[:, :hidden].set(w1.T)
    b1r = jnp.zeros((1, hid_p), b1.dtype).at[0, :hidden].set(b1)
    w2t = jnp.zeros((hid_p, out_f), w2.dtype).at[:hidden, :].set(w2.T)
    b2r = b2.reshape(1, out_f)

    return {
        "w1t": w1t, "b1": b1r, "w2t": w2t, "b2": b2r,
        "in_size": in_f, "hidden_size": hidden, "out_size": out_f,
    }


def _pick_batch_tiling(batch, tb_max=1024):
    """Choose (tile_rows, num_tiles) with at most ~8 wasted rows per tile."""
    b_pad8 = _round_up(max(batch, 1), 8)
    num_tiles = pl.cdiv(b_pad8, tb_max)
    # Mid-size batches: split into >=2 tiles so the "parallel" grid axis can
    # occupy v7x's second TensorCore (harmless on single-TC v5e/v6e).
    if num_tiles == 1 and b_pad8 >= 256:
        num_tiles = 2
    tb = _round_up(pl.cdiv(b_pad8, num_tiles), 8)
    return tb, num_tiles


def linear_qnet_forward(x, params):
    """x: (B, in_features); params: output of prepare_params. Returns (B, out)."""
    B, in_f = x.shape
    assert in_f == params["in_size"]
    w1t, b1r, w2t, b2r = params["w1t"], params["b1"], params["w2t"], params["b2"]
    hid_p, out_f = w2t.shape
    hidden = params["hidden_size"]

    tb, num_tiles = _pick_batch_tiling(B)

    itemsize = jnp.dtype(x.dtype).itemsize
    flops = 2 * B * (in_f * hidden + hidden * out_f)
    bytes_accessed = (
        B * (in_f + out_f) * itemsize
        + w1t.size * w1t.dtype.itemsize + b1r.size * b1r.dtype.itemsize
        + w2t.size * w2t.dtype.itemsize + b2r.size * b2r.dtype.itemsize
    )

    return pl.pallas_call(
        qnet_kernel,
        out_shape=jax.ShapeDtypeStruct((B, out_f), x.dtype),
        grid=(num_tiles,),
        in_specs=[
            # x: streamed per batch tile at its true feature width; a ragged
            # final tile (B not a multiple of tb) is clipped by Pallas.
            pl.BlockSpec((tb, in_f), lambda i: (i, 0)),
            # weights/biases: constant index_map -> VMEM-resident across tiles
            pl.BlockSpec((in_f, hid_p), lambda i: (0, 0)),
            pl.BlockSpec((1, hid_p), lambda i: (0, 0)),
            pl.BlockSpec((hid_p, out_f), lambda i: (0, 0)),
            pl.BlockSpec((1, out_f), lambda i: (0, 0)),
        ],
        out_specs=pl.BlockSpec((tb, out_f), lambda i: (i, 0)),
        compiler_params=pltpu.CompilerParams(
            dimension_semantics=("parallel",),
        ),
        cost_estimate=pl.CostEstimate(
            flops=flops, transcendentals=0, bytes_accessed=bytes_accessed),
    )(x, w1t, b1r, w2t, b2r)


def init_params(key, input_size, hidden_size, output_size, dtype=jnp.float32):
    """nn.Linear-style init: U(-1/sqrt(fan_in), +1/sqrt(fan_in))."""
    k1, k2, k3, k4 = jax.random.split(key, 4)
    bound1 = 1.0 / jnp.sqrt(jnp.array(input_size, dtype))
    bound2 = 1.0 / jnp.sqrt(jnp.array(hidden_size, dtype))
    w1 = jax.random.uniform(k1, (hidden_size, input_size), dtype, -bound1, bound1)
    b1 = jax.random.uniform(k2, (hidden_size,), dtype, -bound1, bound1)
    w2 = jax.random.uniform(k3, (output_size, hidden_size), dtype, -bound2, bound2)
    b2 = jax.random.uniform(k4, (output_size,), dtype, -bound2, bound2)
    return w1, b1, w2, b2


# TODO(synk): load()/save() checkpoint I/O from the PyTorch module is host-side
# file handling and has no Pallas equivalent; omitted on purpose.

if __name__ == "__main__":
    # Snake/minecraft Q-net shapes: 11 state features, 32 hidden, 3 actions.
    input_size, hidden_size, output_size = 11, 32, 3

    key = jax.random.PRNGKey(0)
    kx, kx2, kp = jax.random.split(key, 3)
    w1, b1, w2, b2 = init_params(kp, input_size, hidden_size, output_size)
    params = prepare_params(w1, b1, w2, b2)   # one-time packing

    def ref_forward(x):
        return jnp.maximum(x @ w1.T + b1, 0.0) @ w2.T + b2

    # Latency regime: tiny batch -> single grid step, single pallas_call.
    x_small = jax.random.normal(kx, (4, input_size), jnp.float32)
    out_small = jax.block_until_ready(linear_qnet_forward(x_small, params))
    assert out_small.shape == (4, output_size)
    assert jnp.allclose(out_small, ref_forward(x_small), atol=1e-5, rtol=1e-5)

    # Throughput regime: mid-size batch -> 2 "parallel" tiles, ragged last tile.
    x_big = jax.random.normal(kx2, (300, input_size), jnp.float32)
    out_big = jax.block_until_ready(linear_qnet_forward(x_big, params))
    assert out_big.shape == (300, output_size)
    assert jnp.allclose(out_big, ref_forward(x_big), atol=1e-5, rtol=1e-5)

    print("KERNEL_OK")
</pallas_src>

<mosaic_0001>
module attributes {stable_mosaic.version = 11 : i64} {
  func.func @qnet_kernel(%arg0: i32, %arg1: memref<8x11xf32, #tpu.memory_space<vmem>>, %arg2: memref<11x128xf32, #tpu.memory_space<vmem>>, %arg3: memref<1x128xf32, #tpu.memory_space<vmem>>, %arg4: memref<128x3xf32, #tpu.memory_space<vmem>>, %arg5: memref<1x3xf32, #tpu.memory_space<vmem>>, %arg6: memref<8x3xf32, #tpu.memory_space<vmem>>) attributes {dimension_semantics = [#tpu.dimension_semantics<parallel>], iteration_bounds = array<i64: 1>, scalar_prefetch = 0 : i64, scratch_operands = 0 : i64, tpu.core_type = #tpu.core_type<tc>, window_params = [{transform_indices = @transform_0, window_bounds = array<i64: 8, 11>}, {pipeline_mode = #tpu.pipeline_mode<synchronous>, transform_indices = @transform_1, window_bounds = array<i64: 11, 128>}, {pipeline_mode = #tpu.pipeline_mode<synchronous>, transform_indices = @transform_2, window_bounds = array<i64: 1, 128>}, {pipeline_mode = #tpu.pipeline_mode<synchronous>, transform_indices = @transform_3, window_bounds = array<i64: 128, 3>}, {pipeline_mode = #tpu.pipeline_mode<synchronous>, transform_indices = @transform_4, window_bounds = array<i64: 1, 3>}, {transform_indices = @transform_5, window_bounds = array<i64: 8, 3>}]} {
    %c0 = arith.constant 0 : index
    %c0_0 = arith.constant 0 : index
    %0 = vector.load %arg1[%c0, %c0_0] : memref<8x11xf32, #tpu.memory_space<vmem>>, vector<8x11xf32>
    %c0_1 = arith.constant 0 : index
    %c0_2 = arith.constant 0 : index
    %1 = vector.load %arg2[%c0_1, %c0_2] : memref<11x128xf32, #tpu.memory_space<vmem>>, vector<11x128xf32>
    %cst = arith.constant dense<0.000000e+00> : vector<8x128xf32>
    %2 = tpu.matmul %0, %1, %cst {dimension_numbers = #tpu.dot_dimension_numbers<[1], [0], [0], [1], [0, 0, 1, 1], [], []>} : vector<8x11xf32>, vector<11x128xf32>, vector<8x128xf32> -> vector<8x128xf32>
    %c0_3 = arith.constant 0 : index
    %c0_4 = arith.constant 0 : index
    %3 = vector.load %arg3[%c0_3, %c0_4] : memref<1x128xf32, #tpu.memory_space<vmem>>, vector<1x128xf32>
    %4 = vector.broadcast %3 : vector<1x128xf32> to vector<8x128xf32>
    %5 = arith.addf %2, %4 : vector<8x128xf32>
    %cst_5 = arith.constant 0.000000e+00 : f32
    %6 = vector.broadcast %cst_5 : f32 to vector<8x128xf32>
    %7 = arith.maximumf %5, %6 : vector<8x128xf32>
    %c0_6 = arith.constant 0 : index
    %c0_7 = arith.constant 0 : index
    %8 = vector.load %arg4[%c0_6, %c0_7] : memref<128x3xf32, #tpu.memory_space<vmem>>, vector<128x3xf32>
    %cst_8 = arith.constant dense<0.000000e+00> : vector<8x3xf32>
    %9 = tpu.matmul %7, %8, %cst_8 {dimension_numbers = #tpu.dot_dimension_numbers<[1], [0], [0], [1], [0, 0, 1, 1], [], []>} : vector<8x128xf32>, vector<128x3xf32>, vector<8x3xf32> -> vector<8x3xf32>
    %c0_9 = arith.constant 0 : index
    %c0_10 = arith.constant 0 : index
    %10 = vector.load %arg5[%c0_9, %c0_10] : memref<1x3xf32, #tpu.memory_space<vmem>>, vector<1x3xf32>
    %11 = vector.broadcast %10 : vector<1x3xf32> to vector<8x3xf32>
    %12 = arith.addf %9, %11 : vector<8x3xf32>
    %c0_11 = arith.constant 0 : index
    %c0_12 = arith.constant 0 : index
    %13 = vector.load %arg6[%c0_11, %c0_12] : memref<8x3xf32, #tpu.memory_space<vmem>>, vector<8x3xf32>
    tpu.vector_store %arg6[%c0_11, %c0_12], %12 {strides = array<i32>} : memref<8x3xf32, #tpu.memory_space<vmem>>, vector<8x3xf32>,
    return
  }
  func.func @transform_0(%arg0: i32) -> (i32, i32) {
    %c0_i32 = arith.constant 0 : i32
    %c0_i32_0 = arith.constant 0 : i32
    return %arg0, %c0_i32 : i32, i32
  }
  func.func @transform_1(%arg0: i32) -> (i32, i32) {
    %c0_i32 = arith.constant 0 : i32
    %c0_i32_0 = arith.constant 0 : i32
    %c0_i32_1 = arith.constant 0 : i32
    return %c0_i32, %c0_i32_0 : i32, i32
  }
  func.func @transform_2(%arg0: i32) -> (i32, i32) {
    %c0_i32 = arith.constant 0 : i32
    %c0_i32_0 = arith.constant 0 : i32
    %c0_i32_1 = arith.constant 0 : i32
    return %c0_i32, %c0_i32_0 : i32, i32
  }
  func.func @transform_3(%arg0: i32) -> (i32, i32) {
    %c0_i32 = arith.constant 0 : i32
    %c0_i32_0 = arith.constant 0 : i32
    %c0_i32_1 = arith.constant 0 : i32
    return %c0_i32, %c0_i32_0 : i32, i32
  }
  func.func @transform_4(%arg0: i32) -> (i32, i32) {
    %c0_i32 = arith.constant 0 : i32
    %c0_i32_0 = arith.constant 0 : i32
    %c0_i32_1 = arith.constant 0 : i32
    return %c0_i32, %c0_i32_0 : i32, i32
  }
  func.func @transform_5(%arg0: i32) -> (i32, i32) {
    %c0_i32 = arith.constant 0 : i32
    %c0_i32_0 = arith.constant 0 : i32
    return %arg0, %c0_i32 : i32, i32
  }
}

</mosaic_0001>

<llo_original>
// kernel: tpu_custom_call.1
$region0: #{tpu_custom_call.1}
  #allocation0 [shape = 'u32[]', space=smem, size = 0x4, offset = 0x4, fixed_abs, tag = 'smem constant byte address 0x4 - core index']
  #allocation1 [shape = 'u32[72,128]{1,0:T(1,128)}', space=vmem, size = 0x9000, scoped, tag = 'internal scratch']
  %s0 = inlined_call_operand.vmem [shape: f32[4,11], index: 0, kind: input, shape index: {}]
  %s1 = inlined_call_operand.vmem [shape: f32[11,128], index: 1, kind: input, shape index: {}]
  %s2 = inlined_call_operand.vmem [shape: f32[1,128], index: 2, kind: input, shape index: {}]
  %s3 = inlined_call_operand.vmem [shape: f32[128,3], index: 3, kind: input, shape index: {}]
  %s4 = inlined_call_operand.vmem [shape: f32[1,3], index: 4, kind: input, shape index: {}]
  %s5 = inlined_call_operand.hbm [shape: f32[4,3], index: 5, kind: output, shape index: {}]
  %s6 = sld [smem:[#allocation0]]
  $region30: #{tpu_custom_call.1} parent=0
    _
  %s8 = ssub.s32 1, %s6
  %s9 = scalar_select 0, %s8, %s6
  $region1: #{tpu_custom_call.1} parent=0
    #allocation2 [shape = 'u8[4096]{0}', space=vmem, size = 0x1000, scoped, tag = 'output window, operand 0, single buffered']
    #allocation3 [shape = 's32[1]{0}', space=sflag, size = 0x4, scoped, tag = 'scoped memory for tpu_custom_call.1']
    %10 = vsyncpa [#allocation3], 0
    // Predicated region
    $region2: #{tpu_custom_call.1} parent=1 // pred_check
      _
    $region3: #{tpu_custom_call.1} parent=1 // pred_check_branch
      %12 = sbr.rel (0) target = $region5
    $region4: #{tpu_custom_call.1} parent=1 // pred_region
      _
    $region5: #{tpu_custom_call.1} parent=1 // pred_fallthru
      _
    // Predicated region
    $region6: #{tpu_custom_call.1} parent=1 // pred_check
      _
    $region7: #{tpu_custom_call.1} parent=1 // pred_check_branch
      %14 = sbr.rel (0) target = $region9
    $region8: #{tpu_custom_call.1} parent=1 // pred_region
      _
    $region9: #{tpu_custom_call.1} parent=1 // pred_fallthru
      _
    // Predicated region
    $region10: #{tpu_custom_call.1} parent=1 // pred_check
      _
    $region11: #{tpu_custom_call.1} parent=1 // pred_check_branch
      %16 = sbr.rel (0) target = $region13
    $region12: #{tpu_custom_call.1} parent=1 // pred_region
      _
    $region13: #{tpu_custom_call.1} parent=1 // pred_fallthru
      _
    // Predicated region
    $region14: #{tpu_custom_call.1} parent=1 // pred_check
      _
    $region15: #{tpu_custom_call.1} parent=1 // pred_check_branch
      %18 = sbr.rel (0) target = $region17
    $region16: #{tpu_custom_call.1} parent=1 // pred_region
      _
    $region17: #{tpu_custom_call.1} parent=1 // pred_fallthru
      _
    // Predicated region
    $region18: #{tpu_custom_call.1} parent=1 // pred_check
      _
    $region19: #{tpu_custom_call.1} parent=1 // pred_check_branch
      %20 = sbr.rel (0) target = $region21
    $region20: #{tpu_custom_call.1} parent=1 // pred_region
      _
    $region21: #{tpu_custom_call.1} parent=1 // pred_fallthru
      _
    %v21 = vld [vmem:[%s0] sm:$0xff]
    %v22 = vld [vmem:[%s1] sm:$0xff]
    %v23 = vld [vmem:[%s1 + $0x8] sm:$0x7]
    %v24 = vld [vmem:[%s2] sm:$0x1]
    %v26 = vperm.slane %v24, 0
    %vm28 = vcmask 89088
    %v30 = vsel %vm28, %v21, 0
    %vm32 = vcmask 1042432
    %v34 = vsel %vm32, %v23, 0
    %36 = vmatpush.msra.mxu0 0.0
    %37 = vmatpush.msra.mxu0 0.0
    %38 = vmatpush.msra.mxu0 0.0
    %39 = vmatpush.msra.mxu0 0.0
    %40 = vmatpush.msra.mxu0 0.0
    %41 = vmatpush.msra.mxu0 0.0
    %42 = vmatpush.msra.mxu0 0.0
    %43 = vmatpush.msra.mxu0 0.0
    %44 = vmatpush.msra.mxu0 0.0
    %45 = vmatpush.msra.mxu0 0.0
    %46 = vmatpush.msra.mxu0 0.0
    %47 = vmatpush.msra.mxu0 0.0
    %48 = vmatpush.msra.mxu0 0.0
    %49 = vmatpush.msra.mxu0 0.0
    %50 = vmatpush.msra.mxu0 %v34
    %51 = vmatpush.msra.mxu0 %v22
    %52 = vmatmul.f32.gmra.mxu0 %v30
    %v53 = vpop.f32.mrf.mxu0
    %v54 = vadd.f32 %v26, %v53
    %55 = vdwg.mxu0
    %v56 = vmax.f32 %v54, 0.0
    %v57 = vld [vmem:[%s3] sm:$0xff]
    %v58 = vld [vmem:[%s3 + $0x8] sm:$0xff]
    %v59 = vld [vmem:[%s3 + $0x10] sm:$0xff]
    %v60 = vld [vmem:[%s3 + $0x18] sm:$0xff]
    %v61 = vld [vmem:[%s3 + $0x20] sm:$0xff]
    %v62 = vld [vmem:[%s3 + $0x28] sm:$0xff]
    %v63 = vld [vmem:[%s3 + $0x30] sm:$0xff]
    %v64 = vld [vmem:[%s3 + $0x38] sm:$0xff]
    %v65 = vld [vmem:[%s3 + $0x40] sm:$0xff]
    %v66 = vld [vmem:[%s3 + $0x48] sm:$0xff]
    %v67 = vld [vmem:[%s3 + $0x50] sm:$0xff]
    %v68 = vld [vmem:[%s3 + $0x58] sm:$0xff]
    %v69 = vld [vmem:[%s3 + $0x60] sm:$0xff]
    %v70 = vld [vmem:[%s3 + $0x68] sm:$0xff]
    %v71 = vld [vmem:[%s3 + $0x70] sm:$0xff]
    %v72 = vld [vmem:[%s3 + $0x78] sm:$0xff]
    %v73 = vld [vmem:[%s4] sm:$0x1]
    %v75 = vperm.slane %v73, 0
    %77 = vmatpush.msra.mxu0 %v72
    %78 = vmatpush.msra.mxu0 %v71
    %79 = vmatpush.msra.mxu0 %v70
    %80 = vmatpush.msra.mxu0 %v69
    %81 = vmatpush.msra.mxu0 %v68
    %82 = vmatpush.msra.mxu0 %v67
    %83 = vmatpush.msra.mxu0 %v66
    %84 = vmatpush.msra.mxu0 %v65
    %85 = vmatpush.msra.mxu0 %v64
    %86 = vmatpush.msra.mxu0 %v63
    %87 = vmatpush.msra.mxu0 %v62
    %88 = vmatpush.msra.mxu0 %v61
    %89 = vmatpush.msra.mxu0 %v60
    %90 = vmatpush.msra.mxu0 %v59
    %91 = vmatpush.msra.mxu0 %v58
    %92 = vmatpush.msra.mxu0 %v57
    %93 = vmatmul.f32.gmra.mxu0 %v56
    %v94 = vpop.f32.mrf.mxu0
    %v95 = vadd.f32 %v75, %v94
    %96 = vdwg.mxu0
    %vm97 = vcmask 23552
    %98 = vst.msk [vmem:[#allocation2] sm:$0xff] %vm97, %v95
    // Predicated region
    $region22: #{tpu_custom_call.1} parent=1 // pred_check
      _
    $region23: #{tpu_custom_call.1} parent=1 // pred_check_branch
      %100 = sbr.rel (0) target = $region25
    $region24: #{tpu_custom_call.1} parent=1 // pred_region
      %102 = vsyncadd [#allocation3], 64
      %s103 = sshll.u32 [#allocation2], 4
      %s104 = int_to_ptr.vmem [resolvable:$true] %s103
      %s105 = sshll.u32 %s5, 4
      %s106 = int_to_ptr.hbm [resolvable:$true] %s105
      %111 = dma.vmem_to_hbm [thread:$0]  %s104, 64, %s106, [#allocation3], 64, 64, 4
    $region25: #{tpu_custom_call.1} parent=1 // pred_fallthru
      _
    // Predicated region
    $region26: #{tpu_custom_call.1} parent=1 // pred_check
      _
    $region27: #{tpu_custom_call.1} parent=1 // pred_check_branch
      %113 = sbr.rel (0) target = $region29
    $region28: #{tpu_custom_call.1} parent=1 // pred_region
      %115 = dma.done [#allocation3], 128
    $region29: #{tpu_custom_call.1} parent=1 // pred_fallthru
      _
    %116 = vsyncpa [#allocation3], 1

</llo_original>
